<compile_context>
chip_gen: v7x
topology: tpu7x:2x2x1
jax: 0.10.0
libtpu: 0.0.40
codegen_flags: <defaults>
</compile_context>

<pallas_src>
import functools

import jax
import jax.numpy as jnp
from jax.experimental import pallas as pl
from jax.experimental.pallas import tpu as pltpu

LANES = 128
SUBLANES = 8
ROW_CHUNK = 256             # rows per inner fori_loop step (multiple of 8/16/32)
PREFERRED_TILE_ROWS = 2048  # 2048*128*4B = 1 MiB per f32 input tile


def _round_up(x, m):
    return ((x + m - 1) // m) * m


def _min_sublane_multiple(*dtypes):
    """Minimum row multiple so sub-32-bit dtypes stay tile-aligned."""
    m = SUBLANES
    for dt in dtypes:
        itemsize = jnp.dtype(dt).itemsize
        m = max(m, SUBLANES * max(1, 4 // max(1, itemsize)))  # 8 / 16 / 32
    return m


def _num_tensorcores():
    """2 on dual-TensorCore chips (v4/v5p/v7x), else 1. Safe fallback = 1."""
    try:
        kind = jax.devices()[0].device_kind.lower()
    except Exception:
        return 1
    if any(tag in kind for tag in ("v7", "7x", "v4", "v5p")):
        return 2
    return 1


def _dice_partial_kernel(fake_ref, real_ref, acc_ref, *,
                         alpha, n_valid, tile_rows, tiles_per_core,
                         row_chunk, needs_mask):
    """Accumulate per-core partial sums for the dice loss.

    fake_ref, real_ref : (tile_rows, LANES) VMEM tiles (native dtype)
    acc_ref            : (1, 2, 8, LANES) f32 output block, resident across
                         the sequential axis: [0]=sum(f*r), [1]=sum(f)+sum(r)
    """
    c = pl.program_id(0)   # core / stream-split index ("parallel")
    t = pl.program_id(1)   # sequential tile index ("arbitrary")

    @pl.when(t == 0)
    def _init():
        acc_ref[...] = jnp.zeros_like(acc_ref)

    n_chunks = tile_rows // row_chunk
    half_alpha = 0.5 * alpha

    def fold(v):
        # (row_chunk, LANES) -> (8, LANES): vreg-aligned slab adds, pure VALU,
        # no cross-lane (XLU) work in the hot loop.
        return v.reshape(row_chunk // SUBLANES, SUBLANES, LANES).sum(axis=0)

    def accumulate(masked):
        def body(i, carry):
            acc_p, acc_s = carry
            start = pl.multiple_of(i * row_chunk, row_chunk)
            x = fake_ref[pl.ds(start, row_chunk), :].astype(jnp.float32)
            r = real_ref[pl.ds(start, row_chunk), :].astype(jnp.float32)
            # sigmoid(alpha*x) = 0.5*(1+tanh(alpha*x/2)): EUP slot, no divide.
            f = 0.5 * (jnp.tanh(half_alpha * x) + 1.0)
            if masked:
                # Only the boundary tile pays for this (gated by pl.when).
                base = ((c * tiles_per_core + t) * tile_rows
                        + i * row_chunk) * LANES
                row_id = jax.lax.broadcasted_iota(
                    jnp.int32, (row_chunk, LANES), 0)
                lane_id = jax.lax.broadcasted_iota(
                    jnp.int32, (row_chunk, LANES), 1)
                valid = (base + row_id * LANES + lane_id) < n_valid
                f = jnp.where(valid, f, 0.0)
                r = jnp.where(valid, r, 0.0)
            return (acc_p + fold(f * r), acc_s + fold(f + r))

        zero = jnp.zeros((SUBLANES, LANES), jnp.float32)
        acc_p, acc_s = jax.lax.fori_loop(
            0, n_chunks, body, (zero, zero), unroll=True)  # n_chunks <= 8
        acc_ref[0, 0] += acc_p
        acc_ref[0, 1] += acc_s

    if needs_mask:
        tile_elems = tile_rows * LANES
        block_start = (c * tiles_per_core + t) * tile_elems
        block_end = block_start + tile_elems

        @pl.when(block_end <= n_valid)          # fully-valid tile: no masking
        def _full_tile():
            accumulate(masked=False)

        @pl.when(jnp.logical_and(block_start < n_valid, block_end > n_valid))
        def _boundary_tile():                   # the single straddling tile
            accumulate(masked=True)
        # block_start >= n_valid (clamped duplicate block): skip entirely.
    else:
        accumulate(masked=False)


def dice_loss(fake, real, alpha=10, smooth=1):
    """Pallas TPU implementation of DiceLoss.forward(fake, real) -> scalar."""
    assert fake.shape == real.shape
    n = int(fake.size)
    ncores = _num_tensorcores()
    rows = -(-n // LANES)
    sub = _min_sublane_multiple(fake.dtype, real.dtype)

    fake_flat = jnp.ravel(fake)   # native dtype; no wrapper upcast
    real_flat = jnp.ravel(real)
    if rows * LANES != n:
        # Rare ragged case (n not a multiple of 128): tiny zero-pad so the
        # (free) 2-D reshape below is possible; the in-kernel mask discards it.
        pad = rows * LANES - n
        fake_flat = jnp.pad(fake_flat, (0, pad))
        real_flat = jnp.pad(real_flat, (0, pad))
    fake2d = fake_flat.reshape(rows, LANES)
    real2d = real_flat.reshape(rows, LANES)

    # Tile sizing: tile_rows is always a multiple of row_chunk and of the
    # dtype sublane multiple, so the inner fori_loop divides the tile exactly.
    rows_per_core = -(-rows // ncores)
    if rows_per_core <= ROW_CHUNK:
        tile_rows = _round_up(max(rows_per_core, 1), sub)
        row_chunk = tile_rows
    else:
        tile_rows = min(PREFERRED_TILE_ROWS,
                        _round_up(rows_per_core, ROW_CHUNK))
        row_chunk = ROW_CHUNK

    total_blocks = -(-rows // tile_rows)
    tiles_per_core = -(-total_blocks // ncores)
    has_dup = ncores * tiles_per_core != total_blocks
    needs_mask = (rows * LANES != n) or (total_blocks * tile_rows != rows) \
        or has_dup

    if has_dup:
        # Clamp fully-out-of-range logical blocks onto a valid block; the
        # in-kernel pl.when skips their accumulation entirely.
        def in_map(c, t):
            return (jnp.minimum(c * tiles_per_core + t, total_blocks - 1), 0)
    else:
        def in_map(c, t):
            return (c * tiles_per_core + t, 0)

    kernel = functools.partial(
        _dice_partial_kernel,
        alpha=float(alpha), n_valid=n, tile_rows=int(tile_rows),
        tiles_per_core=int(tiles_per_core), row_chunk=int(row_chunk),
        needs_mask=bool(needs_mask))

    partial = pl.pallas_call(
        kernel,
        out_shape=jax.ShapeDtypeStruct((ncores, 2, SUBLANES, LANES),
                                       jnp.float32),
        grid_spec=pltpu.PrefetchScalarGridSpec(
            num_scalar_prefetch=0,
            grid=(ncores, tiles_per_core),
            in_specs=[
                pl.BlockSpec((tile_rows, LANES), in_map),
                pl.BlockSpec((tile_rows, LANES), in_map),
            ],
            out_specs=pl.BlockSpec((1, 2, SUBLANES, LANES),
                                   lambda c, t: (c, 0, 0, 0)),
        ),
        compiler_params=pltpu.CompilerParams(
            dimension_semantics=("parallel", "arbitrary")),
    )(fake2d, real2d)

    # Tiny finalize in the wrapper: one cross-lane reduction + dice formula.
    sums = jnp.sum(partial, axis=(0, 2, 3))   # [sum(f*r), sum(f)+sum(r)]
    smooth_f = jnp.float32(smooth)
    intersection = sums[0] + smooth_f
    union = sums[1] + smooth_f
    return 1.0 - (2.0 * intersection) / union


def dice_loss_ref(fake, real, alpha=10, smooth=1):
    """Pure-JAX reference matching the PyTorch module exactly."""
    f = 1.0 / (1.0 + jnp.exp(-alpha * fake.astype(jnp.float32)))
    r = real.astype(jnp.float32)
    intersection = jnp.sum(f * r) + smooth
    union = jnp.sum(f) + jnp.sum(r) + smooth
    return 1.0 - (2.0 * intersection) / union


if __name__ == "__main__":
    key = jax.random.PRNGKey(0)
    k1, k2 = jax.random.split(key)
    # NCHW, small shapes: batch=2, channels=4, H=W=16
    fake = jax.random.normal(k1, (2, 4, 16, 16), jnp.float32)
    real = (jax.random.uniform(k2, (2, 4, 16, 16)) > 0.5).astype(jnp.float32)

    out = dice_loss(fake, real, alpha=10, smooth=1)
    out = jax.block_until_ready(out)

    ref = dice_loss_ref(fake, real, alpha=10, smooth=1)
    assert jnp.allclose(out, ref, rtol=1e-5, atol=1e-5), (out, ref)
    print("KERNEL_OK")
</pallas_src>

<mosaic_0001>
module attributes {stable_mosaic.version = 11 : i64} {
  func.func @_dice_partial_kernel(%arg0: i32, %arg1: i32, %arg2: memref<16x128xf32, #tpu.memory_space<vmem>>, %arg3: memref<16x128xf32, #tpu.memory_space<vmem>>, %arg4: memref<1x2x8x128xf32, #tpu.memory_space<vmem>>) attributes {dimension_semantics = [#tpu.dimension_semantics<parallel>, #tpu.dimension_semantics<arbitrary>], iteration_bounds = array<i64: 1, 1>, scalar_prefetch = 0 : i64, scratch_operands = 0 : i64, tpu.core_type = #tpu.core_type<tc>, window_params = [{transform_indices = @transform_0, window_bounds = array<i64: 16, 128>}, {transform_indices = @transform_1, window_bounds = array<i64: 16, 128>}, {transform_indices = @transform_2, window_bounds = array<i64: 1, 2, 8, 128>}]} {
    %c0_i32 = arith.constant 0 : i32
    %0 = arith.cmpi eq, %arg1, %c0_i32 : i32
    %1 = arith.extui %0 : i1 to i32
    %c0_i32_0 = arith.constant 0 : i32
    %2 = arith.cmpi ne, %1, %c0_i32_0 : i32
    scf.if %2 {
      %cst_23 = arith.constant 0.000000e+00 : f32
      %37 = vector.broadcast %cst_23 : f32 to vector<1x2x8x128xf32>
      %c0_24 = arith.constant 0 : index
      %c0_25 = arith.constant 0 : index
      %c0_26 = arith.constant 0 : index
      %c0_27 = arith.constant 0 : index
      %38 = vector.load %arg4[%c0_24, %c0_25, %c0_26, %c0_27] : memref<1x2x8x128xf32, #tpu.memory_space<vmem>>, vector<1x2x8x128xf32>
      tpu.vector_store %arg4[%c0_24, %c0_25, %c0_26, %c0_27], %37 {strides = array<i32>} : memref<1x2x8x128xf32, #tpu.memory_space<vmem>>, vector<1x2x8x128xf32>,
    } else {
    }
    %cst = arith.constant 0.000000e+00 : f32
    %3 = vector.broadcast %cst : f32 to vector<8x128xf32>
    %c0_i32_1 = arith.constant 0 : i32
    %c16_i32 = arith.constant 16 : i32
    %4 = arith.muli %c0_i32_1, %c16_i32 : i32
    %5 = tpu.assume_multiple %4, 16 : i32
    %6 = arith.index_cast %5 : i32 to index
    %c0 = arith.constant 0 : index
    %7 = vector.load %arg2[%6, %c0] : memref<16x128xf32, #tpu.memory_space<vmem>>, vector<16x128xf32>
    %8 = arith.index_cast %5 : i32 to index
    %c0_2 = arith.constant 0 : index
    %9 = vector.load %arg3[%8, %c0_2] : memref<16x128xf32, #tpu.memory_space<vmem>>, vector<16x128xf32>
    %cst_3 = arith.constant 5.000000e+00 : f32
    %10 = vector.broadcast %cst_3 : f32 to vector<16x128xf32>
    %11 = arith.mulf %10, %7 : vector<16x128xf32>
    %12 = math.tanh %11 : vector<16x128xf32>
    %cst_4 = arith.constant 1.000000e+00 : f32
    %13 = vector.broadcast %cst_4 : f32 to vector<16x128xf32>
    %14 = arith.addf %12, %13 : vector<16x128xf32>
    %cst_5 = arith.constant 5.000000e-01 : f32
    %15 = vector.broadcast %cst_5 : f32 to vector<16x128xf32>
    %16 = arith.mulf %15, %14 : vector<16x128xf32>
    %17 = arith.mulf %16, %9 : vector<16x128xf32>
    %18 = vector.shape_cast %17 : vector<16x128xf32> to vector<2x8x128xf32>
    %cst_6 = arith.constant dense<0.000000e+00> : vector<8x128xf32>
    %19 = vector.multi_reduction <add>, %18, %cst_6 [0] : vector<2x8x128xf32> to vector<8x128xf32>
    %20 = arith.addf %3, %19 : vector<8x128xf32>
    %21 = arith.addf %16, %9 : vector<16x128xf32>
    %22 = vector.shape_cast %21 : vector<16x128xf32> to vector<2x8x128xf32>
    %cst_7 = arith.constant dense<0.000000e+00> : vector<8x128xf32>
    %23 = vector.multi_reduction <add>, %22, %cst_7 [0] : vector<2x8x128xf32> to vector<8x128xf32>
    %24 = arith.addf %3, %23 : vector<8x128xf32>
    %c1_i32 = arith.constant 1 : i32
    %c0_8 = arith.constant 0 : index
    %c0_9 = arith.constant 0 : index
    %c0_10 = arith.constant 0 : index
    %c0_11 = arith.constant 0 : index
    %25 = vector.load %arg4[%c0_8, %c0_9, %c0_10, %c0_11] : memref<1x2x8x128xf32, #tpu.memory_space<vmem>>, vector<1x1x8x128xf32>
    %26 = vector.shape_cast %25 : vector<1x1x8x128xf32> to vector<8x128xf32>
    %27 = arith.addf %26, %20 : vector<8x128xf32>
    %c0_12 = arith.constant 0 : index
    %c0_13 = arith.constant 0 : index
    %c0_14 = arith.constant 0 : index
    %c0_15 = arith.constant 0 : index
    %28 = vector.load %arg4[%c0_12, %c0_13, %c0_14, %c0_15] : memref<1x2x8x128xf32, #tpu.memory_space<vmem>>, vector<1x1x8x128xf32>
    %29 = vector.shape_cast %28 : vector<1x1x8x128xf32> to vector<8x128xf32>
    %30 = vector.shape_cast %27 : vector<8x128xf32> to vector<1x1x8x128xf32>
    tpu.vector_store %arg4[%c0_12, %c0_13, %c0_14, %c0_15], %30 {strides = array<i32>} : memref<1x2x8x128xf32, #tpu.memory_space<vmem>>, vector<1x1x8x128xf32>,
    %c0_16 = arith.constant 0 : index
    %c1 = arith.constant 1 : index
    %c0_17 = arith.constant 0 : index
    %c0_18 = arith.constant 0 : index
    %31 = vector.load %arg4[%c0_16, %c1, %c0_17, %c0_18] : memref<1x2x8x128xf32, #tpu.memory_space<vmem>>, vector<1x1x8x128xf32>
    %32 = vector.shape_cast %31 : vector<1x1x8x128xf32> to vector<8x128xf32>
    %33 = arith.addf %32, %24 : vector<8x128xf32>
    %c0_19 = arith.constant 0 : index
    %c1_20 = arith.constant 1 : index
    %c0_21 = arith.constant 0 : index
    %c0_22 = arith.constant 0 : index
    %34 = vector.load %arg4[%c0_19, %c1_20, %c0_21, %c0_22] : memref<1x2x8x128xf32, #tpu.memory_space<vmem>>, vector<1x1x8x128xf32>
    %35 = vector.shape_cast %34 : vector<1x1x8x128xf32> to vector<8x128xf32>
    %36 = vector.shape_cast %33 : vector<8x128xf32> to vector<1x1x8x128xf32>
    tpu.vector_store %arg4[%c0_19, %c1_20, %c0_21, %c0_22], %36 {strides = array<i32>} : memref<1x2x8x128xf32, #tpu.memory_space<vmem>>, vector<1x1x8x128xf32>,
    return
  }
  func.func @transform_0(%arg0: i32, %arg1: i32) -> (i32, i32) {
    %c1_i32 = arith.constant 1 : i32
    %0 = arith.muli %arg0, %c1_i32 : i32
    %1 = arith.addi %0, %arg1 : i32
    %c0_i32 = arith.constant 0 : i32
    %c0_i32_0 = arith.constant 0 : i32
    return %1, %c0_i32 : i32, i32
  }
  func.func @transform_1(%arg0: i32, %arg1: i32) -> (i32, i32) {
    %c1_i32 = arith.constant 1 : i32
    %0 = arith.muli %arg0, %c1_i32 : i32
    %1 = arith.addi %0, %arg1 : i32
    %c0_i32 = arith.constant 0 : i32
    %c0_i32_0 = arith.constant 0 : i32
    return %1, %c0_i32 : i32, i32
  }
  func.func @transform_2(%arg0: i32, %arg1: i32) -> (i32, i32, i32, i32) {
    %c0_i32 = arith.constant 0 : i32
    %c0_i32_0 = arith.constant 0 : i32
    %c0_i32_1 = arith.constant 0 : i32
    %c0_i32_2 = arith.constant 0 : i32
    return %arg0, %c0_i32, %c0_i32_0, %c0_i32_1 : i32, i32, i32, i32
  }
}

</mosaic_0001>

<llo_original>
// kernel: tpu_custom_call.1
$region0: #{tpu_custom_call.1}
  #allocation0 [shape = 'u32[]', space=smem, size = 0x4, offset = 0x4, fixed_abs, tag = 'smem constant byte address 0x4 - core index']
  #allocation1 [shape = 'u32[144,128]{1,0:T(1,128)}', space=vmem, size = 0x12000, scoped, tag = 'internal scratch']
  %s0 = inlined_call_operand.hbm [shape: f32[16,128], index: 0, kind: input, shape index: {}]
  %s1 = inlined_call_operand.hbm [shape: f32[16,128], index: 1, kind: input, shape index: {}]
  %s2 = inlined_call_operand.hbm [shape: f32[1,2,8,128], index: 2, kind: output, shape index: {}]
  %s3 = sld [smem:[#allocation0]]
  $region30: #{tpu_custom_call.1} parent=0
    _
  %s5 = ssub.s32 1, %s3
  %s6 = scalar_select 0, %s5, %s3
  $region1: #{tpu_custom_call.1} parent=0
    #allocation2 [shape = 'u8[8192]{0}', space=vmem, size = 0x2000, scoped, tag = 'input window, operand 0, single buffered']
    #allocation3 [shape = 's32[1]{0}', space=sflag, size = 0x4, scoped, tag = 'scoped memory for tpu_custom_call.1']
    #allocation4 [shape = 's32[1]{0}', space=sflag, size = 0x4, scoped, tag = 'scoped memory for tpu_custom_call.1']
    #allocation5 [shape = 'u8[8192]{0}', space=vmem, size = 0x2000, scoped, tag = 'input window, operand 1, single buffered']
    #allocation6 [shape = 's32[1]{0}', space=sflag, size = 0x4, scoped, tag = 'scoped memory for tpu_custom_call.1']
    #allocation7 [shape = 'u8[8192]{0}', space=vmem, size = 0x2000, scoped, tag = 'output window, operand 0, single buffered']
    %7 = vsyncpa [#allocation3], 0
    %8 = vsyncpa [#allocation6], 0
    %9 = vsyncpa [#allocation4], 0
    // Predicated region
    $region2: #{tpu_custom_call.1} parent=1 // pred_check
      _
    $region3: #{tpu_custom_call.1} parent=1 // pred_check_branch
      %11 = sbr.rel (0) target = $region5
    $region4: #{tpu_custom_call.1} parent=1 // pred_region
      %s12 = sadd.s32 0, 0
      %s13 = smul.u32 2, %s12
      %s15 = ssub.s32 256, 256
      %16 = vsyncadd [#allocation3], %s15
      %s17 = smul.addr %s13, 128
      %s18 = scalar_lea.hbm %s0, %s17
      %s19 = sshll.u32 [#allocation2], 4
      %s20 = int_to_ptr.vmem [resolvable:$true] %s19
      %25 = dma.hbm_to_vmem [thread:$0]  %s18, 256, %s20, [#allocation3], 128, 128, 8
    $region5: #{tpu_custom_call.1} parent=1 // pred_fallthru
      _
    // Predicated region
    $region6: #{tpu_custom_call.1} parent=1 // pred_check
      _
    $region7: #{tpu_custom_call.1} parent=1 // pred_check_branch
      %27 = sbr.rel (0) target = $region9
    $region8: #{tpu_custom_call.1} parent=1 // pred_region
      %s28 = sadd.s32 0, 0
      %s29 = smul.u32 2, %s28
      %s31 = ssub.s32 256, 256
      %32 = vsyncadd [#allocation6], %s31
      %s33 = smul.addr %s29, 128
      %s34 = scalar_lea.hbm %s1, %s33
      %s35 = sshll.u32 [#allocation5], 4
      %s36 = int_to_ptr.vmem [resolvable:$true] %s35
      %41 = dma.hbm_to_vmem [thread:$0]  %s34, 256, %s36, [#allocation6], 128, 128, 8
    $region9: #{tpu_custom_call.1} parent=1 // pred_fallthru
      _
    // Predicated region
    $region10: #{tpu_custom_call.1} parent=1 // pred_check
      _
    $region11: #{tpu_custom_call.1} parent=1 // pred_check_branch
      %43 = sbr.rel (0) target = $region13
    $region12: #{tpu_custom_call.1} parent=1 // pred_region
      %44 = dma.done [#allocation3], 256
    $region13: #{tpu_custom_call.1} parent=1 // pred_fallthru
      _
    // Predicated region
    $region14: #{tpu_custom_call.1} parent=1 // pred_check
      _
    $region15: #{tpu_custom_call.1} parent=1 // pred_check_branch
      %46 = sbr.rel (0) target = $region17
    $region16: #{tpu_custom_call.1} parent=1 // pred_region
      %47 = dma.done [#allocation6], 256
    $region17: #{tpu_custom_call.1} parent=1 // pred_fallthru
      _
    %s48 = sadd.s32 0, 0
    %s49 = smul.u32 2, %s48
    %s50 = sadd.s32 0, 0
    %s51 = smul.u32 2, %s50
    %p52 = scmp.eq.s32.totalorder 0, 0
    // Predicated region
    $region18: #{tpu_custom_call.1} parent=1 // pred_check
      %p53 = pneg %p52
    $region19: #{tpu_custom_call.1} parent=1 // pred_check_branch
      %55 = sbr.rel (%p53) target = $region21
    $region20: #{tpu_custom_call.1} parent=1 // pred_region
      %56 = vst [vmem:[#allocation7] sm:$0xff] 0.0
      %57 = vst [vmem:[#allocation7 + $0x8] sm:$0xff] 0.0
    $region21: #{tpu_custom_call.1} parent=1 // pred_fallthru
      _
    %v58 = vld [vmem:[#allocation2] sm:$0xff]
    %v59 = vld [vmem:[#allocation2 + $0x8] sm:$0xff]
    %v60 = vld [vmem:[#allocation5] sm:$0xff]
    %v61 = vld [vmem:[#allocation5 + $0x8] sm:$0xff]
    %v62 = vmul.f32 %v58, 5.0
    %v63 = vmul.f32 %v59, 5.0
    %v64 = vtanh.pop %v62
    %v65 = vtanh.pop %v63
    %v66 = vadd.f32 %v64, 1.0
    %v67 = vadd.f32 %v65, 1.0
    %v68 = vmul.f32 %v66, 0.5
    %v69 = vmul.f32 %v67, 0.5
    %v70 = vmul.f32 %v68, %v60
    %v71 = vmul.f32 %v69, %v61
    %v72 = vadd.f32 %v70, %v71
    %v73 = vadd.f32 %v72, 0.0
    %v74 = vadd.f32 %v68, %v60
    %v75 = vadd.f32 %v69, %v61
    %v76 = vadd.f32 %v74, %v75
    %v77 = vadd.f32 %v76, 0.0
    %v78 = vld [vmem:[#allocation7] sm:$0xff]
    %v79 = vadd.f32 %v78, %v73
    %80 = vst [vmem:[#allocation7] sm:$0xff] %v79
    %s81 = scalar_lea.vmem [#allocation7], 8
    %v82 = vld [vmem:[%s81] sm:$0xff]
    %v83 = vadd.f32 %v82, %v77
    %84 = vst [vmem:[%s81] sm:$0xff] %v83
    // Predicated region
    $region22: #{tpu_custom_call.1} parent=1 // pred_check
      _
    $region23: #{tpu_custom_call.1} parent=1 // pred_check_branch
      %86 = sbr.rel (0) target = $region25
    $region24: #{tpu_custom_call.1} parent=1 // pred_region
      %s88 = ssub.s32 256, 256
      %89 = vsyncadd [#allocation4], %s88
      %s90 = sshll.u32 [#allocation7], 4
      %s91 = int_to_ptr.vmem [resolvable:$true] %s90
      %96 = dma.vmem_to_hbm [thread:$0]  %s91, 256, %s2, [#allocation4], 128, 128, 8
    $region25: #{tpu_custom_call.1} parent=1 // pred_fallthru
      _
    // Predicated region
    $region26: #{tpu_custom_call.1} parent=1 // pred_check
      _
    $region27: #{tpu_custom_call.1} parent=1 // pred_check_branch
      %98 = sbr.rel (0) target = $region29
    $region28: #{tpu_custom_call.1} parent=1 // pred_region
      %99 = dma.done [#allocation4], 256
    $region29: #{tpu_custom_call.1} parent=1 // pred_fallthru
      _
    %100 = vsyncpa [#allocation3], 1
    %101 = vsyncpa [#allocation6], 1
    %102 = vsyncpa [#allocation4], 1

</llo_original>
